<compile_context>
chip_gen: v6e
topology: v6e:2x2x1
jax: 0.10.0
libtpu: 0.0.40
codegen_flags: <defaults>
</compile_context>

<pallas_src>
import functools

import jax
import jax.numpy as jnp
from jax import lax
from jax.experimental import pallas as pl
from jax.experimental.pallas import tpu as pltpu


def _round_up(x, m):
    return ((x + m - 1) // m) * m


def _focal_loss_kernel(logits_ref, targets_ref, partial_ref, *,
                       alpha, gamma, label_smoothing, n_total, block_rows):
    """One grid step: focal-loss partial sum of one row-block of logits."""
    i = pl.program_id(0)

    x = logits_ref[...].astype(jnp.float32)               # (tm, C) f32 compute
    t = targets_ref[...]                                   # (tm, 1) int32
    tm, c = x.shape

    # Max-shifted log-sum-exp.  The full (tm, C) log-prob tile is never formed:
    # with smoothing weights q_c = (1-eps)*[c==t] + eps/C (sum_c q_c == 1),
    #   ce = lse - sum_c q_c * shifted_c
    # NOTE: out-of-range target ids (e.g. ignore_index=-1 or t>=C) are not
    # checked; they silently drop the target term (torch would raise).
    m = jnp.max(x, axis=-1, keepdims=True)
    shifted = x - m
    lse = jnp.log(jnp.sum(jnp.exp(shifted), axis=-1, keepdims=True))     # (tm, 1)

    eps = label_smoothing
    w_other = eps / c
    w_target = (1.0 - eps) + w_other
    col = lax.broadcasted_iota(jnp.int32, (tm, c), 1)
    q = jnp.where(col == t, w_target, w_other)             # single select
    ce = lse - jnp.sum(q * shifted, axis=-1, keepdims=True)  # single fused reduction

    pt = jnp.exp(-ce)
    u = 1.0 - pt
    g = float(gamma)
    if g == 0.0:
        mod = jnp.ones_like(u)
    elif g.is_integer() and 0.0 < g <= 8.0:
        # integer gamma: repeated VALU multiplies instead of exp/log on the EUP
        mod = u
        for _ in range(int(g) - 1):
            mod = mod * u
    else:
        mod = u ** g
    focal = alpha * mod * ce

    # Tail rows (>= n_total) of the last block may hold garbage.  All math above
    # is row-wise so any NaN/Inf stays in its own row; this select zeroes those
    # rows (select does not propagate NaN/Inf from the unselected operand).
    row_ids = lax.broadcasted_iota(jnp.int32, (tm, 1), 0) + i * block_rows
    focal = jnp.where(row_ids < n_total, focal, 0.0)

    s = jnp.sum(focal)                                      # block scalar partial
    # Lane-dense (1, 1, 128) store: unmasked vst, full-lane writeback DMA.
    partial_ref[...] = jnp.broadcast_to(s, (1, 1, 128)).astype(jnp.float32)


def _choose_block_rows(n, c, itemsize, vmem_budget_bytes=24 << 20, max_rows=32768):
    """Pick the largest row tile that keeps the *padded* VMEM footprint inside a
    conservative budget (v7x has only 64 MiB physical VMEM).

    Per-row VMEM cost model (all lane padding accounted):
      * 2 x double-buffered logits tile:    2 * round_up(C,128) * itemsize
      * 2 x double-buffered targets tile:   2 * 512 B  ((tm,1) i32 pads to 128 lanes)
      * ~3 live (tm, Cpad) f32 body temps:  3 * round_up(C,128) * 4
      * a few (tm, 1) f32 per-row temps:    4 * 512 B
    """
    row_align = max(8, 32 // max(1, itemsize))             # 8 for f32, 16 for bf16
    c_pad = _round_up(c, 128)
    per_row = 2 * c_pad * itemsize + 2 * 512 + 3 * c_pad * 4 + 4 * 512
    rows = max(row_align, vmem_budget_bytes // per_row)
    rows = min(rows, max_rows)

    n_padded = _round_up(n, row_align)
    # Keep >= 2 grid steps on mid/large inputs so the 'parallel' grid axis can
    # actually shard across both v7x TensorCores.
    if rows >= n_padded and n_padded * c_pad * 4 > (2 << 20):
        rows = -(-n_padded // 2)
    rows = min(rows, n_padded)
    rows = max(row_align, (rows // row_align) * row_align)
    return int(rows)


def focal_loss(logits, targets, *, alpha=1.0, gamma=2.0,
               label_smoothing=0.1, reduction="mean", block_rows=None):
    """Pallas focal loss. logits: [N, C] float (f32 or bf16), targets: [N] int ids."""
    # TODO(synk): reduction='none' (per-sample [N] output) not implemented; module default is 'mean'.
    assert reduction in ("mean", "sum")
    n, c = logits.shape
    itemsize = jnp.dtype(logits.dtype).itemsize
    c_pad = _round_up(c, 128)
    if block_rows is None:
        block_rows = _choose_block_rows(n, c, itemsize)
    block_rows = int(block_rows)
    num_blocks = -(-n // block_rows)                       # masked tail block, no divisibility assert
    targets_2d = targets.astype(jnp.int32).reshape(n, 1)
    # TODO(synk): a lane-dense (num_blocks, block_rows) targets layout + in-kernel
    # relayout would shrink the padded targets buffers further; kept as (N, 1) for
    # a guaranteed-supported lowering and accounted for below instead.

    kernel = functools.partial(
        _focal_loss_kernel,
        alpha=float(alpha),
        gamma=float(gamma),
        label_smoothing=float(label_smoothing),
        n_total=int(n),
        block_rows=block_rows,
    )

    # VMEM accounting with lane padding (review fix): logits pad C -> c_pad, the
    # (block_rows, 1) i32 targets tile pads to 512 B/row, plus live body temps.
    logits_tile = block_rows * c_pad * itemsize
    targets_tile = block_rows * 512
    body_scratch = 3 * block_rows * c_pad * 4 + 4 * block_rows * 512
    vmem_limit = 2 * (logits_tile + targets_tile) + body_scratch + (2 << 20)
    vmem_limit = int(min(48 << 20, max(20 << 20, vmem_limit)))   # <=48 MiB keeps v7x (64 MiB) safe

    cost = pl.CostEstimate(
        flops=int(10 * n * c + 16 * n),
        transcendentals=int(n * c + 3 * n),
        bytes_accessed=int(n * c * itemsize + n * 4 + num_blocks * 128 * 4),
    )

    partials = pl.pallas_call(
        kernel,
        out_shape=jax.ShapeDtypeStruct((num_blocks, 1, 128), jnp.float32),
        grid_spec=pltpu.PrefetchScalarGridSpec(
            num_scalar_prefetch=0,
            grid=(num_blocks,),
            in_specs=[
                pl.BlockSpec((block_rows, c), lambda i: (i, 0)),
                pl.BlockSpec((block_rows, 1), lambda i: (i, 0)),
            ],
            out_specs=pl.BlockSpec((1, 1, 128), lambda i: (i, 0, 0)),
        ),
        compiler_params=pltpu.CompilerParams(
            dimension_semantics=("parallel",),             # per-block partials -> no serial accumulator
            vmem_limit_bytes=vmem_limit,
        ),
        cost_estimate=cost,
    )(logits, targets_2d)

    total = jnp.sum(partials[:, 0, 0])                     # tiny host-graph reduce over num_blocks
    if reduction == "mean":
        return total / n
    return total


def _focal_loss_ref(logits, targets, alpha=1.0, gamma=2.0,
                    label_smoothing=0.1, reduction="mean"):
    """Pure-JAX reference mirroring torch F.cross_entropy(label_smoothing=0.1)."""
    n, c = logits.shape
    logp = jax.nn.log_softmax(logits.astype(jnp.float32), axis=-1)
    onehot = jax.nn.one_hot(targets, c, dtype=jnp.float32)
    q = (1.0 - label_smoothing) * onehot + label_smoothing / c
    ce = -jnp.sum(q * logp, axis=-1)
    pt = jnp.exp(-ce)
    focal = alpha * (1.0 - pt) ** gamma * ce
    return jnp.mean(focal) if reduction == "mean" else jnp.sum(focal)


if __name__ == "__main__":
    key = jax.random.PRNGKey(0)
    k1, k2, k3, k4, k5, k6 = jax.random.split(key, 6)

    # Case 1: small aligned batch, auto row tile (single block).
    N1, C1 = 16, 32
    logits1 = jax.random.normal(k1, (N1, C1), dtype=jnp.float32)
    targets1 = jax.random.randint(k2, (N1,), 0, C1, dtype=jnp.int32)
    out1 = jax.block_until_ready(focal_loss(logits1, targets1, alpha=1.0, gamma=2.0))
    ref1 = _focal_loss_ref(logits1, targets1)
    assert jnp.allclose(out1, ref1, atol=1e-5, rtol=1e-5), (out1, ref1)

    # Case 2: N not a multiple of the row tile -> masked tail block + multi-block
    # 'parallel' partial sums.
    N2, C2 = 24, 32
    logits2 = jax.random.normal(k3, (N2, C2), dtype=jnp.float32)
    targets2 = jax.random.randint(k4, (N2,), 0, C2, dtype=jnp.int32)
    out2 = jax.block_until_ready(focal_loss(logits2, targets2, block_rows=16))
    ref2 = _focal_loss_ref(logits2, targets2)
    assert jnp.allclose(out2, ref2, atol=1e-5, rtol=1e-5), (out2, ref2)

    # Case 3: 'sum' reduction.
    out3 = jax.block_until_ready(focal_loss(logits1, targets1, reduction="sum"))
    ref3 = _focal_loss_ref(logits1, targets1, reduction="sum")
    assert jnp.allclose(out3, ref3, atol=1e-4, rtol=1e-5), (out3, ref3)

    # Case 4: unaligned N with auto-chosen block_rows (masked tail inside one block).
    N4, C4 = 300, 64
    logits4 = jax.random.normal(k5, (N4, C4), dtype=jnp.float32)
    targets4 = jax.random.randint(k6, (N4,), 0, C4, dtype=jnp.int32)
    out4 = jax.block_until_ready(focal_loss(logits4, targets4))
    ref4 = _focal_loss_ref(logits4, targets4)
    assert jnp.allclose(out4, ref4, atol=1e-5, rtol=1e-5), (out4, ref4)

    print("KERNEL_OK")
</pallas_src>

<mosaic_0001>
module attributes {stable_mosaic.version = 11 : i64} {
  func.func @_focal_loss_kernel(%arg0: i32, %arg1: memref<16x32xf32, #tpu.memory_space<vmem>>, %arg2: memref<16x1xi32, #tpu.memory_space<vmem>>, %arg3: memref<1x1x128xf32, #tpu.memory_space<vmem>>) attributes {dimension_semantics = [#tpu.dimension_semantics<parallel>], iteration_bounds = array<i64: 1>, scalar_prefetch = 0 : i64, scratch_operands = 0 : i64, tpu.core_type = #tpu.core_type<tc>, window_params = [{transform_indices = @transform_0, window_bounds = array<i64: 16, 32>}, {transform_indices = @transform_1, window_bounds = array<i64: 16, 1>}, {transform_indices = @transform_2, window_bounds = array<i64: 1, 1, 128>}]} {
    %c0 = arith.constant 0 : index
    %c0_0 = arith.constant 0 : index
    %0 = vector.load %arg1[%c0, %c0_0] : memref<16x32xf32, #tpu.memory_space<vmem>>, vector<16x32xf32>
    %c0_1 = arith.constant 0 : index
    %c0_2 = arith.constant 0 : index
    %1 = vector.load %arg2[%c0_1, %c0_2] : memref<16x1xi32, #tpu.memory_space<vmem>>, vector<16x1xi32>
    %cst = arith.constant dense<0xFF800000> : vector<16xf32>
    %2 = vector.multi_reduction <maximumf>, %0, %cst [1] : vector<16x32xf32> to vector<16xf32>
    %3 = vector.shape_cast %2 : vector<16xf32> to vector<16x1xf32>
    %4 = vector.broadcast %3 : vector<16x1xf32> to vector<16x32xf32>
    %5 = arith.subf %0, %4 : vector<16x32xf32>
    %6 = math.exp %5 : vector<16x32xf32>
    %cst_3 = arith.constant dense<0.000000e+00> : vector<16xf32>
    %7 = vector.multi_reduction <add>, %6, %cst_3 [1] : vector<16x32xf32> to vector<16xf32>
    %8 = vector.shape_cast %7 : vector<16xf32> to vector<16x1xf32>
    %9 = math.log %8 : vector<16x1xf32>
    %10 = tpu.iota {dimensions = array<i32: 1>} : vector<16x32xi32>
    %11 = vector.broadcast %1 : vector<16x1xi32> to vector<16x32xi32>
    %12 = arith.cmpi eq, %10, %11 : vector<16x32xi32>
    %cst_4 = arith.constant 0.903124988 : f32
    %cst_5 = arith.constant 3.125000e-03 : f32
    %13 = vector.broadcast %cst_4 : f32 to vector<16x32xf32>
    %14 = vector.broadcast %cst_5 : f32 to vector<16x32xf32>
    %15 = arith.select %12, %13, %14 : vector<16x32xi1>, vector<16x32xf32>
    %16 = arith.mulf %15, %5 : vector<16x32xf32>
    %cst_6 = arith.constant dense<0.000000e+00> : vector<16xf32>
    %17 = vector.multi_reduction <add>, %16, %cst_6 [1] : vector<16x32xf32> to vector<16xf32>
    %18 = vector.shape_cast %17 : vector<16xf32> to vector<16x1xf32>
    %19 = arith.subf %9, %18 : vector<16x1xf32>
    %cst_7 = arith.constant 0.000000e+00 : f32
    %20 = vector.broadcast %cst_7 : f32 to vector<16x1xf32>
    %21 = arith.subf %20, %19 : vector<16x1xf32>
    %22 = math.exp %21 : vector<16x1xf32>
    %cst_8 = arith.constant 1.000000e+00 : f32
    %23 = vector.broadcast %cst_8 : f32 to vector<16x1xf32>
    %24 = arith.subf %23, %22 : vector<16x1xf32>
    %25 = arith.mulf %24, %24 : vector<16x1xf32>
    %cst_9 = arith.constant 1.000000e+00 : f32
    %26 = vector.broadcast %cst_9 : f32 to vector<16x1xf32>
    %27 = arith.mulf %26, %25 : vector<16x1xf32>
    %28 = arith.mulf %27, %19 : vector<16x1xf32>
    %29 = tpu.iota {dimensions = array<i32: 0>} : vector<16x1xi32>
    %c16_i32 = arith.constant 16 : i32
    %30 = arith.muli %arg0, %c16_i32 : i32
    %31 = vector.broadcast %30 : i32 to vector<16x1xi32>
    %32 = arith.addi %29, %31 : vector<16x1xi32>
    %c16_i32_10 = arith.constant 16 : i32
    %33 = vector.broadcast %c16_i32_10 : i32 to vector<16x1xi32>
    %34 = arith.cmpi slt, %32, %33 : vector<16x1xi32>
    %cst_11 = arith.constant 0.000000e+00 : f32
    %35 = vector.broadcast %cst_11 : f32 to vector<16x1xf32>
    %36 = arith.select %34, %28, %35 : vector<16x1xi1>, vector<16x1xf32>
    %37 = vector.shape_cast %36 : vector<16x1xf32> to vector<1x16x1xf32>
    %cst_12 = arith.constant dense<0.000000e+00> : vector<1xf32>
    %38 = vector.multi_reduction <add>, %37, %cst_12 [1, 2] : vector<1x16x1xf32> to vector<1xf32>
    %39 = vector.shape_cast %38 : vector<1xf32> to vector<1x1x1xf32>
    %40 = vector.extract %39[0, 0, 0] : f32 from vector<1x1x1xf32>
    %41 = vector.broadcast %40 : f32 to vector<1x1x128xf32>
    %c0_13 = arith.constant 0 : index
    %c0_14 = arith.constant 0 : index
    %c0_15 = arith.constant 0 : index
    %42 = vector.load %arg3[%c0_13, %c0_14, %c0_15] : memref<1x1x128xf32, #tpu.memory_space<vmem>>, vector<1x1x128xf32>
    tpu.vector_store %arg3[%c0_13, %c0_14, %c0_15], %41 {strides = array<i32>} : memref<1x1x128xf32, #tpu.memory_space<vmem>>, vector<1x1x128xf32>,
    return
  }
  func.func @transform_0(%arg0: i32) -> (i32, i32) {
    %c0_i32 = arith.constant 0 : i32
    %c0_i32_0 = arith.constant 0 : i32
    return %arg0, %c0_i32 : i32, i32
  }
  func.func @transform_1(%arg0: i32) -> (i32, i32) {
    %c0_i32 = arith.constant 0 : i32
    %c0_i32_0 = arith.constant 0 : i32
    return %arg0, %c0_i32 : i32, i32
  }
  func.func @transform_2(%arg0: i32) -> (i32, i32, i32) {
    %c0_i32 = arith.constant 0 : i32
    %c0_i32_0 = arith.constant 0 : i32
    %c0_i32_1 = arith.constant 0 : i32
    return %arg0, %c0_i32, %c0_i32_0 : i32, i32, i32
  }
}

</mosaic_0001>

<llo_original>
// kernel: tpu_custom_call.1
$region0: #{tpu_custom_call.1}
  #allocation0 [shape = 'u32[]', space=smem, size = 0x4, offset = 0x4, fixed_abs, tag = 'smem constant byte address 0x4 - core index']
  #allocation1 [shape = 'u32[144,128]{1,0:T(1,128)}', space=vmem, size = 0x12000, scoped, tag = 'internal scratch']
  %s0 = inlined_call_operand.vmem [shape: f32[16,32], index: 0, kind: input, shape index: {}]
  %s1 = inlined_call_operand.vmem [shape: s32[16,1], index: 1, kind: input, shape index: {}]
  %s2 = inlined_call_operand.hbm [shape: f32[1,1,128], index: 2, kind: output, shape index: {}]
  %s3 = sld [smem:[#allocation0]]
  $region18: #{tpu_custom_call.1} parent=0
    _
  %s5 = ssub.s32 1, %s3
  %s6 = scalar_select 0, %s5, %s3
  $region1: #{tpu_custom_call.1} parent=0
    #allocation2 [shape = 'u8[512]{0}', space=vmem, size = 0x400, scoped, tag = 'output window, operand 0, single buffered']
    #allocation3 [shape = 's32[1]{0}', space=sflag, size = 0x4, scoped, tag = 'scoped memory for tpu_custom_call.1']
    %7 = vsyncpa [#allocation3], 0
    // Predicated region
    $region2: #{tpu_custom_call.1} parent=1 // pred_check
      _
    $region3: #{tpu_custom_call.1} parent=1 // pred_check_branch
      %9 = sbr.rel (0) target = $region5
    $region4: #{tpu_custom_call.1} parent=1 // pred_region
      _
    $region5: #{tpu_custom_call.1} parent=1 // pred_fallthru
      _
    // Predicated region
    $region6: #{tpu_custom_call.1} parent=1 // pred_check
      _
    $region7: #{tpu_custom_call.1} parent=1 // pred_check_branch
      %11 = sbr.rel (0) target = $region9
    $region8: #{tpu_custom_call.1} parent=1 // pred_region
      _
    $region9: #{tpu_custom_call.1} parent=1 // pred_fallthru
      _
    %v12 = vld [vmem:[%s0] sm:$0xff]
    %v13 = vld [vmem:[%s0 + $0x8] sm:$0xff]
    %v14 = vld [vmem:[%s1] sm:$0xff]
    %v15 = vld [vmem:[%s1 + $0x8] sm:$0xff]
    %vm16 = vcmask 261120
    %v17 = vsel %vm16, %v12, -inf
    %18 = vmax.xlane.f32.xlu0 %v17
    %v19 = vpop.xlane.xlu0 %18
    %v20 = vsel %vm16, %v13, -inf
    %21 = vmax.xlane.f32.xlu0 %v20
    %v22 = vpop.xlane.xlu0 %21
    %v23 = vsub.f32 %v12, %v19
    %v24 = vsub.f32 %v13, %v22
    %v25 = vmul.f32 %v23, 1.442695
    %v26 = vpow.pop %v25
    %v27 = vmul.f32 %v24, 1.442695
    %v28 = vpow.pop %v27
    %v29 = vsel %vm16, %v26, 0.0
    %30 = vadd.xlane.f32.xlu0 %v29
    %v31 = vpop.xlane.xlu0 %30
    %v32 = vsel %vm16, %v28, 0.0
    %33 = vadd.xlane.f32.xlu0 %v32
    %v34 = vpop.xlane.xlu0 %33
    %v35 = vlog2.pop %v31
    %v36 = vmul.f32 %v35, 0.6931472
    %v37 = vlog2.pop %v34
    %v38 = vmul.f32 %v37, 0.6931472
    %v39 = vlaneseq
    %v40 = vand.u32 %v39, 127
    %41 = vset.pattern.permute.xlu0 0
    %42 = vperm.xlu0 %41, %v14
    %v43 = vpop.permute.xlu0 %42
    %44 = vset.pattern.permute.xlu0 0
    %45 = vperm.xlu0 %44, %v15
    %v46 = vpop.permute.xlu0 %45
    %vm47 = vcmp.eq.s32.totalorder %v40, %v43
    %vm48 = vcmp.eq.s32.totalorder %v40, %v46
    %v49 = vsel %vm47, 0.903125, 0.003125
    %v50 = vsel %vm48, 0.903125, 0.003125
    %v51 = vmul.f32 %v49, %v23
    %v52 = vmul.f32 %v50, %v24
    %v53 = vsel %vm16, %v51, 0.0
    %54 = vadd.xlane.f32.xlu0 %v53
    %v55 = vpop.xlane.xlu0 %54
    %v56 = vsel %vm16, %v52, 0.0
    %57 = vadd.xlane.f32.xlu0 %v56
    %v58 = vpop.xlane.xlu0 %57
    %v59 = vsub.f32 %v36, %v55
    %v60 = vsub.f32 %v38, %v58
    %v61 = vsub.f32 0.0, %v59
    %v62 = vsub.f32 0.0, %v60
    %v63 = vmul.f32 %v61, 1.442695
    %v64 = vpow.pop %v63
    %v65 = vmul.f32 %v62, 1.442695
    %v66 = vpow.pop %v65
    %v67 = vsub.f32 1.0, %v64
    %v68 = vsub.f32 1.0, %v66
    %v69 = vmul.f32 %v67, %v67
    %v70 = vmul.f32 %v68, %v68
    %v71 = vmul.f32 %v69, %v59
    %v72 = vmul.f32 %v70, %v60
    %v73 = vlaneseq
    %v74 = vshrl.u32 %v73, 7
    %v75 = vadd.s32 %v74, 8
    %s76 = smul.u32 0, 16
    %v77 = vstv %s76
    %v78 = vadd.s32 %v74, %v77
    %v79 = vadd.s32 %v75, %v77
    %vm80 = vcmp.lt.s32.totalorder %v78, 16
    %vm81 = vcmp.lt.s32.totalorder %v79, 16
    %v82 = vsel %vm80, %v71, 0.0
    %v83 = vsel %vm81, %v72, 0.0
    %vm84 = vcmask 7168
    %v85 = vsel %vm84, %v82, 0.0
    %v86 = vsel %vm84, %v83, 0.0
    %v87 = vadd.f32 %v85, %v86
    %88 = vadd.xlane.f32.xlu0 %v87
    %v89 = vpop.xlane.xlu0 %88
    %v90 = vrot.slane %v89, 4
    %v91 = vadd.f32 %v89, %v90
    %v92 = vrot.slane %v91, 2
    %v93 = vadd.f32 %v91, %v92
    %v94 = vrot.slane %v93, 1
    %v95 = vadd.f32 %v93, %v94
    %s96 = vtos %v95
    %v97 = vstv %s96
    %98 = vst [vmem:[#allocation2] sm:$0x1] %v97
    // Predicated region
    $region10: #{tpu_custom_call.1} parent=1 // pred_check
      _
    $region11: #{tpu_custom_call.1} parent=1 // pred_check_branch
      %100 = sbr.rel (0) target = $region13
    $region12: #{tpu_custom_call.1} parent=1 // pred_region
      %s102 = ssub.s32 16, 16
      %103 = vsyncadd [#allocation3], %s102
      %s105 = sshll.u32 [#allocation2], 4
      %s106 = int_to_ptr.vmem [resolvable:$true] %s105
      %108 = dma.vmem_to_hbm [thread:$0]  %s106, 16, %s2, [#allocation3]
    $region13: #{tpu_custom_call.1} parent=1 // pred_fallthru
      _
    // Predicated region
    $region14: #{tpu_custom_call.1} parent=1 // pred_check
      _
    $region15: #{tpu_custom_call.1} parent=1 // pred_check_branch
      %110 = sbr.rel (0) target = $region17
    $region16: #{tpu_custom_call.1} parent=1 // pred_region
      %111 = dma.done [#allocation3], 16
    $region17: #{tpu_custom_call.1} parent=1 // pred_fallthru
      _
    %112 = vsyncpa [#allocation3], 1

</llo_original>
